<compile_context>
chip_gen: v6e
topology: v6e:2x2x1
jax: 0.10.0
libtpu: 0.0.40
codegen_flags: <defaults>
</compile_context>

<pallas_src>
import jax
import jax.numpy as jnp
from jax.experimental import pallas as pl
from jax.experimental.pallas import tpu as pltpu


def _fused_kernel(x1_ref, x2_ref, wtb_ref, out_ref):
    x1 = x1_ref[...]           # (M, K)
    x2 = x2_ref[...]           # (K, N)
    wtb = wtb_ref[...]         # (K+1, N): rows 0..K-1 = W^T, row K = bias

    K = x1.shape[1]            # contraction dim of x1 @ x2
    Kin = wtb.shape[0] - 1     # in-features of the Linear (= N here)

    # x = x1 @ x2, unrolled VPU broadcast multiply-adds (no MXU at this size).
    x = x1[:, 0:1] * x2[0:1, :]
    for k in range(1, K):
        x = x + x1[:, k:k + 1] * x2[k:k + 1, :]

    # v1 = x @ W^T + b, unrolled on the VPU; start from the bias row.
    v1 = wtb[Kin:Kin + 1, :]                       # (1, N) -> broadcasts to (M, N)
    for k in range(Kin):
        v1 = v1 + x[:, k:k + 1] * wtb[k:k + 1, :]

    # cat([v1, v1, v1], dim=1) assembled in registers (XLU), single store.
    out_ref[...] = jnp.concatenate([v1, v1, v1], axis=1).astype(out_ref.dtype)


@jax.jit
def model_forward(x1, x2, wtb):
    M = x1.shape[0]
    N = wtb.shape[1]
    return pl.pallas_call(
        _fused_kernel,
        out_shape=jax.ShapeDtypeStruct((M, 3 * N), x1.dtype),
        in_specs=[
            pl.BlockSpec(memory_space=pltpu.MemorySpace.VMEM),
            pl.BlockSpec(memory_space=pltpu.MemorySpace.VMEM),
            pl.BlockSpec(memory_space=pltpu.MemorySpace.VMEM),
        ],
        out_specs=pl.BlockSpec(memory_space=pltpu.MemorySpace.VMEM),
    )(x1, x2, wtb)


def pack_linear_params(w, b):
    """Pack [W^T ; b] into one (in_features+1, out_features) array.

    Done once at parameter-init time (outside jit), so it costs nothing at
    forward time and reduces the kernel's operand/DMA count.
    """
    return jnp.concatenate([w.T, b.reshape(1, -1)], axis=0)


if __name__ == "__main__":
    key = jax.random.PRNGKey(0)
    k1, k2, kw, kb = jax.random.split(key, 4)

    # inputs (matching torch.randn(2, 2) shapes)
    x1 = jax.random.normal(k1, (2, 2), dtype=jnp.float32)
    x2 = jax.random.normal(k2, (2, 2), dtype=jnp.float32)

    # deterministic nn.Linear(2, 2) params (torch-default-style uniform init)
    bound = 1.0 / jnp.sqrt(2.0)
    w = jax.random.uniform(kw, (2, 2), dtype=jnp.float32, minval=-bound, maxval=bound)
    b = jax.random.uniform(kb, (2,), dtype=jnp.float32, minval=-bound, maxval=bound)

    wtb = pack_linear_params(w, b)   # (3, 2), built once outside jit

    out = model_forward(x1, x2, wtb)
    out = jax.block_until_ready(out)

    # reference check in plain JAX (uses the original, untransposed W)
    v1_ref = (x1 @ x2) @ w.T + b
    ref = jnp.concatenate([v1_ref, v1_ref, v1_ref], axis=1)
    assert out.shape == (2, 6)
    assert out.dtype == x1.dtype
    assert jnp.allclose(out, ref, atol=1e-5, rtol=1e-5)

    print("KERNEL_OK")
</pallas_src>

<mosaic_0001>
module attributes {stable_mosaic.version = 11 : i64} {
  func.func @_fused_kernel(%arg0: memref<2x2xf32, #tpu.memory_space<vmem>>, %arg1: memref<2x2xf32, #tpu.memory_space<vmem>>, %arg2: memref<3x2xf32, #tpu.memory_space<vmem>>, %arg3: memref<2x6xf32, #tpu.memory_space<vmem>>) attributes {dimension_semantics = [], scalar_prefetch = 0 : i64, scratch_operands = 0 : i64, tpu.core_type = #tpu.core_type<tc>} {
    %c0 = arith.constant 0 : index
    %c0_0 = arith.constant 0 : index
    %0 = vector.load %arg0[%c0, %c0_0] : memref<2x2xf32, #tpu.memory_space<vmem>>, vector<2x2xf32>
    %c0_1 = arith.constant 0 : index
    %c0_2 = arith.constant 0 : index
    %1 = vector.load %arg1[%c0_1, %c0_2] : memref<2x2xf32, #tpu.memory_space<vmem>>, vector<2x2xf32>
    %c0_3 = arith.constant 0 : index
    %c0_4 = arith.constant 0 : index
    %2 = vector.load %arg2[%c0_3, %c0_4] : memref<3x2xf32, #tpu.memory_space<vmem>>, vector<3x2xf32>
    %3 = vector.extract_strided_slice %0 {offsets = [0, 0], sizes = [2, 1], strides = [1, 1]} : vector<2x2xf32> to vector<2x1xf32>
    %4 = vector.extract_strided_slice %1 {offsets = [0, 0], sizes = [1, 2], strides = [1, 1]} : vector<2x2xf32> to vector<1x2xf32>
    %5 = vector.broadcast %3 : vector<2x1xf32> to vector<2x2xf32>
    %6 = vector.broadcast %4 : vector<1x2xf32> to vector<2x2xf32>
    %7 = arith.mulf %5, %6 : vector<2x2xf32>
    %8 = vector.extract_strided_slice %0 {offsets = [0, 1], sizes = [2, 1], strides = [1, 1]} : vector<2x2xf32> to vector<2x1xf32>
    %9 = vector.extract_strided_slice %1 {offsets = [1, 0], sizes = [1, 2], strides = [1, 1]} : vector<2x2xf32> to vector<1x2xf32>
    %10 = vector.broadcast %8 : vector<2x1xf32> to vector<2x2xf32>
    %11 = vector.broadcast %9 : vector<1x2xf32> to vector<2x2xf32>
    %12 = arith.mulf %10, %11 : vector<2x2xf32>
    %13 = arith.addf %7, %12 : vector<2x2xf32>
    %14 = vector.extract_strided_slice %2 {offsets = [2, 0], sizes = [1, 2], strides = [1, 1]} : vector<3x2xf32> to vector<1x2xf32>
    %15 = vector.extract_strided_slice %13 {offsets = [0, 0], sizes = [2, 1], strides = [1, 1]} : vector<2x2xf32> to vector<2x1xf32>
    %16 = vector.extract_strided_slice %2 {offsets = [0, 0], sizes = [1, 2], strides = [1, 1]} : vector<3x2xf32> to vector<1x2xf32>
    %17 = vector.broadcast %15 : vector<2x1xf32> to vector<2x2xf32>
    %18 = vector.broadcast %16 : vector<1x2xf32> to vector<2x2xf32>
    %19 = arith.mulf %17, %18 : vector<2x2xf32>
    %20 = vector.broadcast %14 : vector<1x2xf32> to vector<2x2xf32>
    %21 = arith.addf %20, %19 : vector<2x2xf32>
    %22 = vector.extract_strided_slice %13 {offsets = [0, 1], sizes = [2, 1], strides = [1, 1]} : vector<2x2xf32> to vector<2x1xf32>
    %23 = vector.extract_strided_slice %2 {offsets = [1, 0], sizes = [1, 2], strides = [1, 1]} : vector<3x2xf32> to vector<1x2xf32>
    %24 = vector.broadcast %22 : vector<2x1xf32> to vector<2x2xf32>
    %25 = vector.broadcast %23 : vector<1x2xf32> to vector<2x2xf32>
    %26 = arith.mulf %24, %25 : vector<2x2xf32>
    %27 = arith.addf %21, %26 : vector<2x2xf32>
    %28 = tpu.concatenate %27, %27, %27 in 1 : vector<2x2xf32>, vector<2x2xf32>, vector<2x2xf32> -> vector<2x6xf32>
    %c0_5 = arith.constant 0 : index
    %c0_6 = arith.constant 0 : index
    %29 = vector.load %arg3[%c0_5, %c0_6] : memref<2x6xf32, #tpu.memory_space<vmem>>, vector<2x6xf32>
    tpu.vector_store %arg3[%c0_5, %c0_6], %28 {strides = array<i32>} : memref<2x6xf32, #tpu.memory_space<vmem>>, vector<2x6xf32>,
    return
  }
}

</mosaic_0001>

<llo_original>
// kernel: model_forward.1
$region0: #{model_forward.1}
  #allocation0 [shape = 'u32[]', space=smem, size = 0x4, offset = 0x4, fixed_abs, tag = 'smem constant byte address 0x4 - core index']
  #allocation1 [shape = 'u32[144,128]{1,0:T(1,128)}', space=vmem, size = 0x12000, scoped, tag = 'internal scratch']
  %s0 = inlined_call_operand.vmem [shape: f32[2,2], index: 0, kind: input, shape index: {}]
  %s1 = inlined_call_operand.vmem [shape: f32[2,2], index: 1, kind: input, shape index: {}]
  %s2 = inlined_call_operand.vmem [shape: f32[3,2], index: 2, kind: input, shape index: {}]
  %s3 = inlined_call_operand.hbm [shape: f32[2,6], index: 3, kind: output, shape index: {}]
  %s4 = sld [smem:[#allocation0]]
  $region22: #{model_forward.1} parent=0
    _
  %s6 = ssub.s32 1, %s4
  %s7 = scalar_select 0, %s6, %s4
  $region1: #{model_forward.1} parent=0
    #allocation2 [shape = 'u8[1024]{0}', space=vmem, size = 0x400, scoped, tag = 'output window, operand 0, single buffered']
    #allocation3 [shape = 's32[1]{0}', space=sflag, size = 0x4, scoped, tag = 'scoped memory for model_forward.1']
    %8 = vsyncpa [#allocation3], 0
    // Predicated region
    $region2: #{model_forward.1} parent=1 // pred_check
      _
    $region3: #{model_forward.1} parent=1 // pred_check_branch
      %10 = sbr.rel (0) target = $region5
    $region4: #{model_forward.1} parent=1 // pred_region
      _
    $region5: #{model_forward.1} parent=1 // pred_fallthru
      _
    // Predicated region
    $region6: #{model_forward.1} parent=1 // pred_check
      _
    $region7: #{model_forward.1} parent=1 // pred_check_branch
      %12 = sbr.rel (0) target = $region9
    $region8: #{model_forward.1} parent=1 // pred_region
      _
    $region9: #{model_forward.1} parent=1 // pred_fallthru
      _
    // Predicated region
    $region10: #{model_forward.1} parent=1 // pred_check
      _
    $region11: #{model_forward.1} parent=1 // pred_check_branch
      %14 = sbr.rel (0) target = $region13
    $region12: #{model_forward.1} parent=1 // pred_region
      _
    $region13: #{model_forward.1} parent=1 // pred_fallthru
      _
    %v15 = vld [vmem:[%s0] sm:$0x3]
    %v16 = vld [vmem:[%s1] sm:$0x3]
    %v17 = vld [vmem:[%s2] sm:$0x7]
    %19 = vset.pattern.permute.xlu0 0
    %20 = vperm.xlu0 %19, %v15
    %v21 = vpop.permute.xlu0 %20
    %v23 = vlaneseq
    %v24 = vshrl.u32 %v23, 7
    %v25 = vsub.s32 0, %v24
    %v26 = vrot.slane %v16, %v25
    %v27 = vmul.f32 %v21, %v26
    %28 = vset.pattern.permute.xlu0 1
    %29 = vperm.xlu0 %28, %v15
    %v30 = vpop.permute.xlu0 %29
    %v32 = vlaneseq
    %v33 = vshrl.u32 %v32, 7
    %v34 = vsub.s32 1, %v33
    %v35 = vrot.slane %v16, %v34
    %v36 = vmul.f32 %v30, %v35
    %v37 = vadd.f32 %v27, %v36
    %39 = vset.pattern.permute.xlu0 0
    %40 = vperm.xlu0 %39, %v37
    %v41 = vpop.permute.xlu0 %40
    %v43 = vlaneseq
    %v44 = vshrl.u32 %v43, 7
    %v45 = vsub.s32 0, %v44
    %v46 = vrot.slane %v17, %v45
    %v47 = vmul.f32 %v41, %v46
    %v48 = vlaneseq
    %v49 = vshrl.u32 %v48, 7
    %v50 = vsub.s32 2, %v49
    %v51 = vrot.slane %v17, %v50
    %v52 = vadd.f32 %v51, %v47
    %53 = vset.pattern.permute.xlu0 1
    %54 = vperm.xlu0 %53, %v37
    %v55 = vpop.permute.xlu0 %54
    %v57 = vlaneseq
    %v58 = vshrl.u32 %v57, 7
    %v59 = vsub.s32 1, %v58
    %v60 = vrot.slane %v17, %v59
    %v61 = vmul.f32 %v55, %v60
    %v62 = vadd.f32 %v52, %v61
    %64 = vrot.lane.b32.xlu0 %v62, 2
    %v65 = vpop.permute.xlu0 %64
    %67 = vrot.lane.b32.xlu0 %v62, 4
    %v68 = vpop.permute.xlu0 %67
    %vm70 = vcmask 15360
    %v71 = vsel %vm70, %v62, %v65
    %vm72 = vcmask 31744
    %v73 = vsel %vm72, %v71, %v68
    %vm74 = vcmask 41984
    %75 = vst.msk [vmem:[#allocation2] sm:$0x3] %vm74, %v73
    // Predicated region
    $region14: #{model_forward.1} parent=1 // pred_check
      _
    $region15: #{model_forward.1} parent=1 // pred_check_branch
      %77 = sbr.rel (0) target = $region17
    $region16: #{model_forward.1} parent=1 // pred_region
      %s79 = ssub.s32 32, 32
      %80 = vsyncadd [#allocation3], %s79
      %s82 = sshll.u32 [#allocation2], 4
      %s83 = int_to_ptr.vmem [resolvable:$true] %s82
      %85 = dma.vmem_to_hbm [thread:$0]  %s83, 32, %s3, [#allocation3]
    $region17: #{model_forward.1} parent=1 // pred_fallthru
      _
    // Predicated region
    $region18: #{model_forward.1} parent=1 // pred_check
      _
    $region19: #{model_forward.1} parent=1 // pred_check_branch
      %87 = sbr.rel (0) target = $region21
    $region20: #{model_forward.1} parent=1 // pred_region
      %88 = dma.done [#allocation3], 32
    $region21: #{model_forward.1} parent=1 // pred_fallthru
      _
    %89 = vsyncpa [#allocation3], 1

</llo_original>
